<compile_context>
chip_gen: v7x
topology: tpu7x:2x2x1
jax: 0.10.0
libtpu: 0.0.40
codegen_flags: <defaults>
</compile_context>

<pallas_src>
import numpy as np
import jax
import jax.numpy as jnp
from jax.experimental import pallas as pl
from jax.experimental.pallas import tpu as pltpu


# ---------------------------------------------------------------------------
# VMEM-aware sizing helpers
# ---------------------------------------------------------------------------

def _vmem_capacity_bytes():
    """Physical VMEM of the local chip; conservative fallback (v7x = 64 MiB)."""
    try:
        info = pltpu.get_tpu_info()
        cap = getattr(info, "vmem_capacity_bytes", None)
        if cap:
            return int(cap)
    except Exception:
        pass
    return 64 * 1024 * 1024


def _vmem_limit_bytes(footprint, capacity):
    """Footprint-derived scoped-VMEM request with headroom, capped well below
    physical capacity (never hand the whole of v7x's 64 MiB to one kernel)."""
    want = int(1.5 * footprint) + (4 << 20)
    return int(min(max(want, 16 << 20), int(0.75 * capacity)))


def _pick_batch_tile(batch, max_rows):
    """Largest batch tile that divides `batch`, fits the VMEM row budget, and
    keeps the sublane dim full-array or a multiple of 8.  Prefer a single grid
    step (grid-step overhead is pure loss on single-TC v5e/v6e); split once for
    dual-TC v7x only when both halves stay sublane-full."""
    max_rows = max(1, int(max_rows))
    if batch <= max_rows:
        bt = batch
    else:
        bt = 1
        for d in range(1, batch + 1):
            if batch % d == 0 and d <= max_rows and d % 8 == 0:
                bt = d
        if bt == 1:  # no multiple-of-8 divisor fits; fall back to any divisor
            for d in range(1, batch + 1):
                if batch % d == 0 and d <= max_rows:
                    bt = d
    if bt == batch and batch % 2 == 0 and (batch // 2) % 8 == 0:
        bt = batch // 2  # two grid steps so both v7x TensorCores get work
    return bt


# ---------------------------------------------------------------------------
# DFT / propagation-kernel construction (host / wrapper side)
# ---------------------------------------------------------------------------

def _dft_matrix(n):
    """Symmetric forward DFT matrix F[j,k] = exp(-2*pi*i*j*k/n), complex64."""
    idx = np.arange(n)
    ang = -2.0 * np.pi * np.outer(idx, idx) / float(n)
    return (np.cos(ang) + 1j * np.sin(ang)).astype(np.complex64)


def generate_angular_spectrum_kernel(shape, pixel_size, wavelength,
                                     numerical_aperture=None,
                                     flag_band_limited=False):
    """Angular-spectrum kernel *phase*:
         i * 2*pi/lambda * sqrt(1 - lambda^2 (fx^2 + fy^2)),
    returned as two (H, W) float32 planes (real, imag).  Evanescent components
    (negative sqrt argument) get a negative real part -> exponential decay."""
    h, w = int(shape[0]), int(shape[1])
    fy = np.fft.fftfreq(h, d=pixel_size)
    fx = np.fft.fftfreq(w, d=pixel_size)
    fxx, fyy = np.meshgrid(fx, fy)                      # fyy varies along rows
    arg = 1.0 - (wavelength ** 2) * (fxx ** 2 + fyy ** 2)
    k0 = 2.0 * np.pi / wavelength
    phase_real = -k0 * np.sqrt(np.maximum(-arg, 0.0))
    phase_imag = k0 * np.sqrt(np.maximum(arg, 0.0))
    # TODO(synk): numerical-aperture / band-limited masking not implemented
    #             (the reference module instantiates it with NA=None, False).
    return (jnp.asarray(phase_real, jnp.float32),
            jnp.asarray(phase_imag, jnp.float32))


def _propagation_kernel_planes(kphase_real, kphase_imag, z, sign, inv_n):
    """K = exp(|z| * kernel_phase), conjugated for z < 0, with the 1/(H*W)
    inverse-FFT normalization folded in (fuses into this elementwise op)."""
    mag = jnp.exp(z * kphase_real) * inv_n
    ang = z * kphase_imag
    return mag * jnp.cos(ang), (sign * mag) * jnp.sin(ang)


# ---------------------------------------------------------------------------
# Fused-operator path (small H*W): one lane-dense real matmul per call
# ---------------------------------------------------------------------------

def _fused_matmul_kernel(x_ref, m_ref, o_ref):
    # (Bt, 2HW) interleaved (re, im) field rows  @  (2HW, 2HW) realified
    # propagation operator.  bf16 MXU operands, f32 accumulation, f32 store.
    o_ref[...] = jnp.dot(x_ref[...].astype(jnp.bfloat16), m_ref[...],
                         preferred_element_type=jnp.float32)


def _fused_pallas_call(x, m_op):
    b, n2 = x.shape
    cap = _vmem_capacity_bytes()
    m_bytes = n2 * n2 * 2                       # bf16 operator, single-buffered
    per_row = n2 * (2 * 4 + 2 * 4 + 2)          # f32 in/out (x2 buffers) + bf16 copy
    budget = max(int(0.4 * cap) - m_bytes, per_row)
    bt = _pick_batch_tile(b, budget // per_row)
    grid = (b // bt,)
    footprint = m_bytes + bt * per_row

    return pl.pallas_call(
        _fused_matmul_kernel,
        out_shape=jax.ShapeDtypeStruct((b, n2), jnp.float32),
        grid=grid,
        in_specs=[
            pl.BlockSpec((bt, n2), lambda i: (i, 0)),
            # operator block never changes -> single buffer (no wasted VMEM)
            pl.BlockSpec((n2, n2), lambda i: (0, 0),
                         pipeline_mode=pl.Buffered(1)),
        ],
        out_specs=pl.BlockSpec((bt, n2), lambda i: (i, 0)),
        compiler_params=pltpu.CompilerParams(
            dimension_semantics=("parallel",),
            vmem_limit_bytes=_vmem_limit_bytes(footprint, cap)),
        cost_estimate=pl.CostEstimate(
            flops=2 * b * n2 * n2, transcendentals=0,
            bytes_accessed=2 * b * n2 * 4 + m_bytes),
    )(x, m_op)


@jax.jit
def _propagate_fused(field, dft2, kphase_real, kphase_imag, z, sign):
    b, h, w, _ = field.shape
    n = h * w
    n2 = 2 * n
    kr, ki = _propagation_kernel_planes(kphase_real, kphase_imag, z, sign, 1.0 / n)
    kc = (kr + 1j * ki).astype(jnp.complex64).reshape(n)
    # T = D @ diag(K/HW) @ conj(D),  D = F_H (x) F_W   (wrapper-side XLA;
    # cheap at the gated sizes, rebuilt per propagation distance).
    t = (dft2 * kc[None, :]) @ jnp.conj(dft2)
    tr = jnp.real(t)
    ti = jnp.imag(t)
    # "Realify" so T acts directly on interleaved (re, im) lanes:
    #   M[2j, 2k] = Re T,  M[2j, 2k+1] = Im T,  M[2j+1, 2k] = -Im T,  M[2j+1, 2k+1] = Re T
    m_op = jnp.stack([jnp.stack([tr, ti], axis=-1),
                      jnp.stack([-ti, tr], axis=-1)],
                     axis=1).reshape(n2, n2).astype(jnp.bfloat16)
    out = _fused_pallas_call(field.reshape(b, n2), m_op)   # zero-copy views in & out
    return out.reshape(b, h, w, 2)


# ---------------------------------------------------------------------------
# Separable-DFT fallback (larger H*W): grid over batch, interleave folded into
# the F_W-side matmuls, conjugate-matmul variant for the inverse DFT
# ---------------------------------------------------------------------------

def _separable_dft_kernel(x_ref, prw_ref, piw_ref, fhr_ref, fhi_ref,
                          qr_ref, qi_ref, kr_ref, ki_ref, o_ref):
    f32 = jnp.float32
    bf16 = jnp.bfloat16

    x = x_ref[0].astype(bf16)                 # (H, 2W) interleaved (re, im)
    prw = prw_ref[...]
    piw = piw_ref[...]
    fhr = fhr_ref[...]
    fhi = fhi_ref[...]
    qr = qr_ref[...]
    qi = qi_ref[...]
    kr = kr_ref[...]
    ki = ki_ref[...]

    # A = X @ F_W  -- the (re, im) de-interleave is folded into the matmul.
    ar = jnp.dot(x, prw, preferred_element_type=f32)
    ai = jnp.dot(x, piw, preferred_element_type=f32)

    # S = F_H @ A
    arb = ar.astype(bf16)
    aib = ai.astype(bf16)
    sr = (jnp.dot(fhr, arb, preferred_element_type=f32)
          - jnp.dot(fhi, aib, preferred_element_type=f32))
    si = (jnp.dot(fhr, aib, preferred_element_type=f32)
          + jnp.dot(fhi, arb, preferred_element_type=f32))

    # P = K * S   (K already carries 1/(H*W) and the sign(z) conjugation)
    pr = sr * kr - si * ki
    pi = sr * ki + si * kr

    # U = conj(F_H) @ P  -- conjugate-matmul variant (no negated F_H copy)
    prb = pr.astype(bf16)
    pib = pi.astype(bf16)
    ur = (jnp.dot(fhr, prb, preferred_element_type=f32)
          + jnp.dot(fhi, pib, preferred_element_type=f32))
    ui = (jnp.dot(fhr, pib, preferred_element_type=f32)
          - jnp.dot(fhi, prb, preferred_element_type=f32))

    # Y = U @ conj(F_W)  -- (re, im) re-interleave folded into the matmul.
    o_ref[0] = (jnp.dot(ur.astype(bf16), qr, preferred_element_type=f32)
                + jnp.dot(ui.astype(bf16), qi, preferred_element_type=f32))


@jax.jit
def _propagate_general(field, prw, piw, fhr, fhi, qr, qi,
                       kphase_real, kphase_imag, z, sign):
    b, h, w, _ = field.shape
    kr, ki = _propagation_kernel_planes(kphase_real, kphase_imag, z, sign,
                                        1.0 / (h * w))
    x = field.reshape(b, h, 2 * w)            # zero-copy interleaved view

    cap = _vmem_capacity_bytes()
    const_bytes = (prw.size + piw.size + fhr.size + fhi.size
                   + qr.size + qi.size) * 2 + (kr.size + ki.size) * 4
    io_bytes = 2 * 2 * (h * 2 * w * 4)        # in + out blocks, double-buffered
    scratch_bytes = 16 * h * w * 4            # bound on live f32/bf16 intermediates
    footprint = const_bytes + io_bytes + scratch_bytes

    def const_spec(arr):
        zeros = (0,) * arr.ndim
        return pl.BlockSpec(arr.shape, lambda bb: zeros,
                            pipeline_mode=pl.Buffered(1))

    field_spec = pl.BlockSpec((1, h, 2 * w), lambda bb: (bb, 0, 0))

    out = pl.pallas_call(
        _separable_dft_kernel,
        out_shape=jax.ShapeDtypeStruct((b, h, 2 * w), jnp.float32),
        grid=(b,),
        in_specs=[field_spec,
                  const_spec(prw), const_spec(piw),
                  const_spec(fhr), const_spec(fhi),
                  const_spec(qr), const_spec(qi),
                  const_spec(kr), const_spec(ki)],
        out_specs=field_spec,
        compiler_params=pltpu.CompilerParams(
            dimension_semantics=("parallel",),
            vmem_limit_bytes=_vmem_limit_bytes(footprint, cap)),
        cost_estimate=pl.CostEstimate(
            flops=16 * b * h * w * (h + w), transcendentals=0,
            bytes_accessed=2 * b * h * 2 * w * 4 + const_bytes),
    )(x, prw, piw, fhr, fhi, qr, qi, kr, ki)

    return out.reshape(b, h, w, 2)


# ---------------------------------------------------------------------------
# Module
# ---------------------------------------------------------------------------

class SingleSlicePropagation:
    """JAX/Pallas port of the PyTorch SingleSlicePropagation module."""

    def __init__(self, shape, pixel_size, wavelength, numerical_aperture=None,
                 flag_band_limited=False, fused_max_pixels=1024):
        h, w = int(shape[0]), int(shape[1])
        self.shape = (h, w)
        self.kphase_real, self.kphase_imag = generate_angular_spectrum_kernel(
            shape, pixel_size, wavelength,
            numerical_aperture=numerical_aperture,
            flag_band_limited=flag_band_limited)

        fh = _dft_matrix(h)
        fw = fh if w == h else _dft_matrix(w)

        # Fused space->space operator for small fields (one matmul per call).
        self._use_fused = (h * w) <= int(fused_max_pixels)
        if self._use_fused:
            # D = F_H (x) F_W : flattened 2-D DFT operator (HW, HW), complex64.
            self._dft2 = jnp.asarray(np.kron(fh, fw), jnp.complex64)
        else:
            fwr = fw.real.astype(np.float32)
            fwi = fw.imag.astype(np.float32)
            # Forward F_W with de-interleave folded in:  A = X_il @ P
            prw = np.zeros((2 * w, w), np.float32)
            piw = np.zeros((2 * w, w), np.float32)
            prw[0::2], prw[1::2] = fwr, -fwi
            piw[0::2], piw[1::2] = fwi, fwr
            # Inverse conj(F_W) with re-interleave folded in:  out_il = Ur@QR + Ui@QI
            qr = np.zeros((w, 2 * w), np.float32)
            qi = np.zeros((w, 2 * w), np.float32)
            qr[:, 0::2], qr[:, 1::2] = fwr, -fwi
            qi[:, 0::2], qi[:, 1::2] = fwi, fwr
            self._prw = jnp.asarray(prw, jnp.bfloat16)
            self._piw = jnp.asarray(piw, jnp.bfloat16)
            self._qr = jnp.asarray(qr, jnp.bfloat16)
            self._qi = jnp.asarray(qi, jnp.bfloat16)
            self._fhr = jnp.asarray(fh.real, jnp.bfloat16)
            self._fhi = jnp.asarray(fh.imag, jnp.bfloat16)

    def forward(self, field_in, propagation_distance):
        # TODO(synk): these Python branches require a concrete (non-traced)
        #             distance, exactly like the PyTorch original.
        if propagation_distance == 0:
            return field_in
        z = float(abs(propagation_distance))
        sign = 1.0 if propagation_distance > 0.0 else -1.0
        if self._use_fused:
            return _propagate_fused(field_in, self._dft2,
                                    self.kphase_real, self.kphase_imag, z, sign)
        return _propagate_general(field_in, self._prw, self._piw,
                                  self._fhr, self._fhi, self._qr, self._qi,
                                  self.kphase_real, self.kphase_imag, z, sign)


# ---------------------------------------------------------------------------
# Self-test
# ---------------------------------------------------------------------------

if __name__ == "__main__":
    key = jax.random.PRNGKey(0)

    def fft_reference(prop, field, z):
        fc = np.asarray(field[..., 0]) + 1j * np.asarray(field[..., 1])
        kphr = np.asarray(prop.kphase_real)
        kphi = np.asarray(prop.kphase_imag)
        mag = np.exp(abs(z) * kphr)
        kc = mag * (np.cos(abs(z) * kphi) + 1j * np.sin(abs(z) * kphi))
        if z < 0:
            kc = np.conj(kc)
        ref = np.fft.ifft2(np.fft.fft2(fc, axes=(-2, -1)) * kc, axes=(-2, -1))
        return np.stack([ref.real, ref.imag], axis=-1).astype(np.float32)

    def check(prop, field, z, tag):
        out = jax.block_until_ready(prop.forward(field, z))
        ref = fft_reference(prop, field, z)
        scale = max(1.0, float(np.max(np.abs(ref))))
        err = float(np.max(np.abs(np.asarray(out, dtype=np.float32) - ref)))
        # bf16 MXU operands with f32 accumulation: 5e-2 relative to field scale.
        assert err <= 5e-2 * scale, f"{tag} z={z}: max abs err {err} (scale {scale})"

    # Fused-operator path (H*W <= 1024): one lane-dense 512x512 matmul per call.
    b, h, w = 4, 16, 16
    key, sub = jax.random.split(key)
    field_small = jax.random.normal(sub, (b, h, w, 2), dtype=jnp.float32)
    prop_small = SingleSlicePropagation((h, w), pixel_size=0.25, wavelength=0.5)
    for z in (1.5, -0.75):
        check(prop_small, field_small, z, "fused")

    # Separable-DFT fallback (forced with fused_max_pixels=0).
    b2, h2, w2 = 2, 32, 32
    key, sub = jax.random.split(key)
    field_big = jax.random.normal(sub, (b2, h2, w2, 2), dtype=jnp.float32)
    prop_big = SingleSlicePropagation((h2, w2), pixel_size=0.3, wavelength=0.6,
                                      fused_max_pixels=0)
    for z in (0.9, -0.6):
        check(prop_big, field_big, z, "separable")

    # Zero-distance branch returns the input unchanged (original semantics).
    assert prop_small.forward(field_small, 0.0) is field_small

    print("KERNEL_OK")
</pallas_src>

<mosaic_0001>
module attributes {stable_mosaic.version = 11 : i64} {
  func.func @_fused_matmul_kernel(%arg0: i32, %arg1: memref<4x512xf32, #tpu.memory_space<vmem>>, %arg2: memref<512x512xbf16, #tpu.memory_space<vmem>>, %arg3: memref<4x512xf32, #tpu.memory_space<vmem>>) attributes {dimension_semantics = [#tpu.dimension_semantics<parallel>], iteration_bounds = array<i64: 1>, scalar_prefetch = 0 : i64, scratch_operands = 0 : i64, tpu.core_type = #tpu.core_type<tc>, window_params = [{transform_indices = @transform_0, window_bounds = array<i64: 4, 512>}, {pipeline_mode = #tpu.pipeline_mode<synchronous>, transform_indices = @transform_1, window_bounds = array<i64: 512, 512>}, {transform_indices = @transform_2, window_bounds = array<i64: 4, 512>}]} {
    %c0 = arith.constant 0 : index
    %c0_0 = arith.constant 0 : index
    %0 = vector.load %arg1[%c0, %c0_0] : memref<4x512xf32, #tpu.memory_space<vmem>>, vector<4x512xf32>
    %1 = arith.truncf %0 : vector<4x512xf32> to vector<4x512xbf16>
    %c0_1 = arith.constant 0 : index
    %c0_2 = arith.constant 0 : index
    %2 = vector.load %arg2[%c0_1, %c0_2] : memref<512x512xbf16, #tpu.memory_space<vmem>>, vector<512x512xbf16>
    %cst = arith.constant dense<0.000000e+00> : vector<4x512xf32>
    %3 = tpu.matmul %1, %2, %cst {dimension_numbers = #tpu.dot_dimension_numbers<[1], [0], [0], [1], [0, 0, 1, 1], [], []>} : vector<4x512xbf16>, vector<512x512xbf16>, vector<4x512xf32> -> vector<4x512xf32>
    %c0_3 = arith.constant 0 : index
    %c0_4 = arith.constant 0 : index
    %4 = vector.load %arg3[%c0_3, %c0_4] : memref<4x512xf32, #tpu.memory_space<vmem>>, vector<4x512xf32>
    tpu.vector_store %arg3[%c0_3, %c0_4], %3 {strides = array<i32>} : memref<4x512xf32, #tpu.memory_space<vmem>>, vector<4x512xf32>,
    return
  }
  func.func @transform_0(%arg0: i32) -> (i32, i32) {
    %c0_i32 = arith.constant 0 : i32
    %c0_i32_0 = arith.constant 0 : i32
    return %arg0, %c0_i32 : i32, i32
  }
  func.func @transform_1(%arg0: i32) -> (i32, i32) {
    %c0_i32 = arith.constant 0 : i32
    %c0_i32_0 = arith.constant 0 : i32
    %c0_i32_1 = arith.constant 0 : i32
    return %c0_i32, %c0_i32_0 : i32, i32
  }
  func.func @transform_2(%arg0: i32) -> (i32, i32) {
    %c0_i32 = arith.constant 0 : i32
    %c0_i32_0 = arith.constant 0 : i32
    return %arg0, %c0_i32 : i32, i32
  }
}

</mosaic_0001>

<llo_original>
// kernel: custom-call.1
$region0: #{custom-call.1}
  %s0 = inlined_call_operand.hbm [shape: c64[256,256], index: 0, kind: input, shape index: {}]
  %s1 = inlined_call_operand.vmem [shape: f32[256,256], index: 1, kind: output, shape index: {}]
  %s2 = scalar_lea.hbm %s0, 8192
  $region1: #{custom-call.1} parent=0
    #allocation0 [shape = 's32[1]{0}', space=sflag, size = 0x4, scoped, tag = 'scoped memory for custom-call.1']
    %3 = vsyncpa [#allocation0], 0
    %s4 = sshll.u32 %s1, 4
    %s5 = int_to_ptr.vmem [resolvable:$true] %s4
    %7 = dma.hbm_to_vmem [thread:$0]  %s2, 8192, %s5, [#allocation0]
    %8 = dma.done [#allocation0], 8192
    %9 = vsyncpa [#allocation0], 1

// kernel: custom-call
$region0: #{custom-call}
  %s0 = inlined_call_operand.hbm [shape: c64[256,256], index: 0, kind: input, shape index: {}]
  %s1 = inlined_call_operand.vmem [shape: f32[256,256], index: 1, kind: output, shape index: {}]
  $region1: #{custom-call} parent=0
    #allocation0 [shape = 's32[1]{0}', space=sflag, size = 0x4, scoped, tag = 'scoped memory for custom-call']
    %2 = vsyncpa [#allocation0], 0
    %s3 = sshll.u32 %s1, 4
    %s4 = int_to_ptr.vmem [resolvable:$true] %s3
    %6 = dma.hbm_to_vmem [thread:$0]  %s0, 8192, %s4, [#allocation0]
    %7 = dma.done [#allocation0], 8192
    %8 = vsyncpa [#allocation0], 1

// kernel: mul.2
$region0: #{mul.2}
  %s0 = inlined_call_operand.vmem [shape: f32[16,16], index: 0, kind: input, shape index: {}]
  %s1 = inlined_call_operand.vmem [shape: f32[256], index: 1, kind: output, shape index: {}]
  $region1: #{mul.2} parent=0
    #allocation0 [shape = 'u8[4096]{0}', space=vmem, size = 0x1000, scoped, tag = 'scoped mem for output reshape']
    %s2 = smov 3
    %v3 = vld [vmem:[%s0] ss:$8 sm:%s2]
    %vm4 = vcmask 130048
    %5 = vst.msk [vmem:[#allocation0] sm:$0x3] %vm4, %v3
    %s6 = scalar_lea.vmem %s0, 7
    %s7 = smov 3
    %v8 = vld [vmem:[%s6] ss:$8 sm:%s7]
    %9 = vrot.lane.b32.xlu0 %v8, 112
    %v10 = vpop.permute.xlu0 %9
    %vm11 = vcmask 1048448
    %12 = vst.msk [vmem:[#allocation0] sm:$0x3] %vm11, %v10
    %s13 = scalar_lea.vmem %s0, 6
    %s14 = smov 3
    %v15 = vld [vmem:[%s13] ss:$8 sm:%s14]
    %16 = vrot.lane.b32.xlu0 %v15, 96
    %v17 = vpop.permute.xlu0 %16
    %vm18 = vcmask 917248
    %19 = vst.msk [vmem:[#allocation0] sm:$0x3] %vm18, %v17
    %s20 = scalar_lea.vmem %s0, 5
    %s21 = smov 3
    %v22 = vld [vmem:[%s20] ss:$8 sm:%s21]
    %23 = vrot.lane.b32.xlu0 %v22, 80
    %v24 = vpop.permute.xlu0 %23
    %vm25 = vcmask 786048
    %26 = vst.msk [vmem:[#allocation0] sm:$0x3] %vm25, %v24
    %s27 = scalar_lea.vmem %s0, 4
    %s28 = smov 3
    %v29 = vld [vmem:[%s27] ss:$8 sm:%s28]
    %30 = vrot.lane.b32.xlu0 %v29, 64
    %v31 = vpop.permute.xlu0 %30
    %vm32 = vcmask 654848
    %33 = vst.msk [vmem:[#allocation0] sm:$0x3] %vm32, %v31
    %s34 = scalar_lea.vmem %s0, 3
    %s35 = smov 3
    %v36 = vld [vmem:[%s34] ss:$8 sm:%s35]
    %37 = vrot.lane.b32.xlu0 %v36, 48
    %v38 = vpop.permute.xlu0 %37
    %vm39 = vcmask 523648
    %40 = vst.msk [vmem:[#allocation0] sm:$0x3] %vm39, %v38
    %s41 = scalar_lea.vmem %s0, 2
    %s42 = smov 3
    %v43 = vld [vmem:[%s41] ss:$8 sm:%s42]
    %44 = vrot.lane.b32.xlu0 %v43, 32
    %v45 = vpop.permute.xlu0 %44
    %vm46 = vcmask 392448
    %47 = vst.msk [vmem:[#allocation0] sm:$0x3] %vm46, %v45
    %s48 = scalar_lea.vmem %s0, 1
    %s49 = smov 3
    %v50 = vld [vmem:[%s48] ss:$8 sm:%s49]
    %51 = vrot.lane.b32.xlu0 %v50, 16
    %v52 = vpop.permute.xlu0 %51
    %vm53 = vcmask 261248
    %54 = vst.msk [vmem:[#allocation0] sm:$0x3] %vm53, %v52
    %s56 = sshllo.u32 0, 2
    %v58 = vld [vmem:[#allocation0] sm:%s56]
    %s59 = sshllo.u32 0, 2
    %60 = vst [vmem:[%s1] sm:%s59] %v58

// kernel: _propagate_fused.1
$region0: #{_propagate_fused.1}
  #allocation0 [shape = 'u32[]', space=smem, size = 0x4, offset = 0x4, fixed_abs, tag = 'smem constant byte address 0x4 - core index']
  #allocation1 [shape = 'u32[144,128]{1,0:T(1,128)}', space=vmem, size = 0x12000, scoped, tag = 'internal scratch']
  %s0 = inlined_call_operand.vmem [shape: f32[4,512], index: 0, kind: input, shape index: {}]
  %s1 = inlined_call_operand.hbm [shape: bf16[512,512], index: 1, kind: input, shape index: {}]
  %s2 = inlined_call_operand.vmem [shape: f32[4,512], index: 2, kind: output, shape index: {}]
  %s3 = sld [smem:[#allocation0]]
  $region22: #{_propagate_fused.1} parent=0
    _
  %s5 = ssub.s32 1, %s3
  %s6 = scalar_select 0, %s5, %s3
  $region1: #{_propagate_fused.1} parent=0
    #allocation2 [shape = 'u8[524288]{0}', space=vmem, size = 0x80000, scoped, tag = 'input window, operand 1, single buffered']
    #allocation3 [shape = 's32[1]{0}', space=sflag, size = 0x4, scoped, tag = 'scoped memory for _propagate_fused.1']
    %7 = vsyncpa [#allocation3], 0
    // Predicated region
    $region2: #{_propagate_fused.1} parent=1 // pred_check
      _
    $region3: #{_propagate_fused.1} parent=1 // pred_check_branch
      %9 = sbr.rel (0) target = $region5
    $region4: #{_propagate_fused.1} parent=1 // pred_region
      _
    $region5: #{_propagate_fused.1} parent=1 // pred_fallthru
      _
    // Predicated region
    $region6: #{_propagate_fused.1} parent=1 // pred_check
      _
    $region7: #{_propagate_fused.1} parent=1 // pred_check_branch
      %11 = sbr.rel (0) target = $region9
    $region8: #{_propagate_fused.1} parent=1 // pred_region
      %s13 = ssub.s32 16384, 16384
      %14 = vsyncadd [#allocation3], %s13
      %s15 = sshll.u32 [#allocation2], 4
      %s16 = int_to_ptr.vmem [resolvable:$true] %s15
      %21 = dma.hbm_to_vmem [thread:$0]  %s1, 16384, %s16, [#allocation3], 256, 256, 16
    $region9: #{_propagate_fused.1} parent=1 // pred_fallthru
      _
    // Predicated region
    $region10: #{_propagate_fused.1} parent=1 // pred_check
      _
    $region11: #{_propagate_fused.1} parent=1 // pred_check_branch
      %23 = sbr.rel (0) target = $region13
    $region12: #{_propagate_fused.1} parent=1 // pred_region
      %24 = dma.done [#allocation3], 16384
    $region13: #{_propagate_fused.1} parent=1 // pred_fallthru
      _
    %v25 = vld [vmem:[%s0] sm:$0xff]
    %v26 = vld [vmem:[%s0 + $0x8] sm:$0xff]
    %v29 = vcombine.high %v25, %v25
    %v30 = vcombine.high %v26, %v26
    %v33 = vpack.c.bf16 %v25, %v25
    %v34 = vpack.c.bf16 %v29, %v29
    %v35 = vpack.c.bf16 %v26, %v26
    %v36 = vpack.c.bf16 %v30, %v30
    %v37 = vld [vmem:[#allocation2] sm:$0xff]
    %v38 = vld [vmem:[#allocation2 + $0x8] sm:$0xff]
    %v39 = vld [vmem:[#allocation2 + $0x10] sm:$0xff]
    %v40 = vld [vmem:[#allocation2 + $0x18] sm:$0xff]
    %v41 = vld [vmem:[#allocation2 + $0x20] sm:$0xff]
    %v42 = vld [vmem:[#allocation2 + $0x28] sm:$0xff]
    %v43 = vld [vmem:[#allocation2 + $0x30] sm:$0xff]
    %v44 = vld [vmem:[#allocation2 + $0x38] sm:$0xff]
    %v45 = vld [vmem:[#allocation2 + $0x40] sm:$0xff]
    %v46 = vld [vmem:[#allocation2 + $0x48] sm:$0xff]
    %v47 = vld [vmem:[#allocation2 + $0x50] sm:$0xff]
    %v48 = vld [vmem:[#allocation2 + $0x58] sm:$0xff]
    %v49 = vld [vmem:[#allocation2 + $0x60] sm:$0xff]
    %v50 = vld [vmem:[#allocation2 + $0x68] sm:$0xff]
    %v51 = vld [vmem:[#allocation2 + $0x70] sm:$0xff]
    %v52 = vld [vmem:[#allocation2 + $0x78] sm:$0xff]
    %v53 = vld [vmem:[#allocation2 + $0x80] sm:$0xff]
    %v54 = vld [vmem:[#allocation2 + $0x88] sm:$0xff]
    %v55 = vld [vmem:[#allocation2 + $0x90] sm:$0xff]
    %v56 = vld [vmem:[#allocation2 + $0x98] sm:$0xff]
    %v57 = vld [vmem:[#allocation2 + $0xa0] sm:$0xff]
    %v58 = vld [vmem:[#allocation2 + $0xa8] sm:$0xff]
    %v59 = vld [vmem:[#allocation2 + $0xb0] sm:$0xff]
    %v60 = vld [vmem:[#allocation2 + $0xb8] sm:$0xff]
    %v61 = vld [vmem:[#allocation2 + $0xc0] sm:$0xff]
    %v62 = vld [vmem:[#allocation2 + $0xc8] sm:$0xff]
    %v63 = vld [vmem:[#allocation2 + $0xd0] sm:$0xff]
    %v64 = vld [vmem:[#allocation2 + $0xd8] sm:$0xff]
    %v65 = vld [vmem:[#allocation2 + $0xe0] sm:$0xff]
    %v66 = vld [vmem:[#allocation2 + $0xe8] sm:$0xff]
    %v67 = vld [vmem:[#allocation2 + $0xf0] sm:$0xff]
    %v68 = vld [vmem:[#allocation2 + $0xf8] sm:$0xff]
    %v69 = vld [vmem:[#allocation2 + $0x100] sm:$0xff]
    %v70 = vld [vmem:[#allocation2 + $0x108] sm:$0xff]
    %v71 = vld [vmem:[#allocation2 + $0x110] sm:$0xff]
    %v72 = vld [vmem:[#allocation2 + $0x118] sm:$0xff]
    %v73 = vld [vmem:[#allocation2 + $0x120] sm:$0xff]
    %v74 = vld [vmem:[#allocation2 + $0x128] sm:$0xff]
    %v75 = vld [vmem:[#allocation2 + $0x130] sm:$0xff]
    %v76 = vld [vmem:[#allocation2 + $0x138] sm:$0xff]
    %v77 = vld [vmem:[#allocation2 + $0x140] sm:$0xff]
    %v78 = vld [vmem:[#allocation2 + $0x148] sm:$0xff]
    %v79 = vld [vmem:[#allocation2 + $0x150] sm:$0xff]
    %v80 = vld [vmem:[#allocation2 + $0x158] sm:$0xff]
    %v81 = vld [vmem:[#allocation2 + $0x160] sm:$0xff]
    %v82 = vld [vmem:[#allocation2 + $0x168] sm:$0xff]
    %v83 = vld [vmem:[#allocation2 + $0x170] sm:$0xff]
    %v84 = vld [vmem:[#allocation2 + $0x178] sm:$0xff]
    %v85 = vld [vmem:[#allocation2 + $0x180] sm:$0xff]
    %v86 = vld [vmem:[#allocation2 + $0x188] sm:$0xff]
    %v87 = vld [vmem:[#allocation2 + $0x190] sm:$0xff]
    %v88 = vld [vmem:[#allocation2 + $0x198] sm:$0xff]
    %v89 = vld [vmem:[#allocation2 + $0x1a0] sm:$0xff]
    %v90 = vld [vmem:[#allocation2 + $0x1a8] sm:$0xff]
    %v91 = vld [vmem:[#allocation2 + $0x1b0] sm:$0xff]
    %v92 = vld [vmem:[#allocation2 + $0x1b8] sm:$0xff]
    %v93 = vld [vmem:[#allocation2 + $0x1c0] sm:$0xff]
    %v94 = vld [vmem:[#allocation2 + $0x1c8] sm:$0xff]
    %v95 = vld [vmem:[#allocation2 + $0x1d0] sm:$0xff]
    %v96 = vld [vmem:[#allocation2 + $0x1d8] sm:$0xff]
    %v97 = vld [vmem:[#allocation2 + $0x1e0] sm:$0xff]
    %v98 = vld [vmem:[#allocation2 + $0x1e8] sm:$0xff]
    %v99 = vld [vmem:[#allocation2 + $0x1f0] sm:$0xff]
    %v100 = vld [vmem:[#allocation2 + $0x1f8] sm:$0xff]
    %v101 = vld [vmem:[#allocation2 + $0x200] sm:$0xff]
    %v102 = vld [vmem:[#allocation2 + $0x208] sm:$0xff]
    %v103 = vld [vmem:[#allocation2 + $0x210] sm:$0xff]
    %v104 = vld [vmem:[#allocation2 + $0x218] sm:$0xff]
    %v105 = vld [vmem:[#allocation2 + $0x220] sm:$0xff]
    %v106 = vld [vmem:[#allocation2 + $0x228] sm:$0xff]
    %v107 = vld [vmem:[#allocation2 + $0x230] sm:$0xff]
    %v108 = vld [vmem:[#allocation2 + $0x238] sm:$0xff]
    %v109 = vld [vmem:[#allocation2 + $0x240] sm:$0xff]
    %v110 = vld [vmem:[#allocation2 + $0x248] sm:$0xff]
    %v111 = vld [vmem:[#allocation2 + $0x250] sm:$0xff]
    %v112 = vld [vmem:[#allocation2 + $0x258] sm:$0xff]
    %v113 = vld [vmem:[#allocation2 + $0x260] sm:$0xff]
    %v114 = vld [vmem:[#allocation2 + $0x268] sm:$0xff]
    %v115 = vld [vmem:[#allocation2 + $0x270] sm:$0xff]
    %v116 = vld [vmem:[#allocation2 + $0x278] sm:$0xff]
    %v117 = vld [vmem:[#allocation2 + $0x280] sm:$0xff]
    %v118 = vld [vmem:[#allocation2 + $0x288] sm:$0xff]
    %v119 = vld [vmem:[#allocation2 + $0x290] sm:$0xff]
    %v120 = vld [vmem:[#allocation2 + $0x298] sm:$0xff]
    %v121 = vld [vmem:[#allocation2 + $0x2a0] sm:$0xff]
    %v122 = vld [vmem:[#allocation2 + $0x2a8] sm:$0xff]
    %v123 = vld [vmem:[#allocation2 + $0x2b0] sm:$0xff]
    %v124 = vld [vmem:[#allocation2 + $0x2b8] sm:$0xff]
    %v125 = vld [vmem:[#allocation2 + $0x2c0] sm:$0xff]
    %v126 = vld [vmem:[#allocation2 + $0x2c8] sm:$0xff]
    %v127 = vld [vmem:[#allocation2 + $0x2d0] sm:$0xff]
    %v128 = vld [vmem:[#allocation2 + $0x2d8] sm:$0xff]
    %v129 = vld [vmem:[#allocation2 + $0x2e0] sm:$0xff]
    %v130 = vld [vmem:[#allocation2 + $0x2e8] sm:$0xff]
    %v131 = vld [vmem:[#allocation2 + $0x2f0] sm:$0xff]
    %v132 = vld [vmem:[#allocation2 + $0x2f8] sm:$0xff]
    %v133 = vld [vmem:[#allocation2 + $0x300] sm:$0xff]
    %v134 = vld [vmem:[#allocation2 + $0x308] sm:$0xff]
    %v135 = vld [vmem:[#allocation2 + $0x310] sm:$0xff]
    %v136 = vld [vmem:[#allocation2 + $0x318] sm:$0xff]
    %v137 = vld [vmem:[#allocation2 + $0x320] sm:$0xff]
    %v138 = vld [vmem:[#allocation2 + $0x328] sm:$0xff]
    %v139 = vld [vmem:[#allocation2 + $0x330] sm:$0xff]
    %v140 = vld [vmem:[#allocation2 + $0x338] sm:$0xff]
    %v141 = vld [vmem:[#allocation2 + $0x340] sm:$0xff]
    %v142 = vld [vmem:[#allocation2 + $0x348] sm:$0xff]
    %v143 = vld [vmem:[#allocation2 + $0x350] sm:$0xff]
    %v144 = vld [vmem:[#allocation2 + $0x358] sm:$0xff]
    %v145 = vld [vmem:[#allocation2 + $0x360] sm:$0xff]
    %v146 = vld [vmem:[#allocation2 + $0x368] sm:$0xff]
    %v147 = vld [vmem:[#allocation2 + $0x370] sm:$0xff]
    %v148 = vld [vmem:[#allocation2 + $0x378] sm:$0xff]
    %v149 = vld [vmem:[#allocation2 + $0x380] sm:$0xff]
    %v150 = vld [vmem:[#allocation2 + $0x388] sm:$0xff]
    %v151 = vld [vmem:[#allocation2 + $0x390] sm:$0xff]
    %v152 = vld [vmem:[#allocation2 + $0x398] sm:$0xff]
    %v153 = vld [vmem:[#allocation2 + $0x3a0] sm:$0xff]
    %v154 = vld [vmem:[#allocation2 + $0x3a8] sm:$0xff]
    %v155 = vld [vmem:[#allocation2 + $0x3b0] sm:$0xff]
    %v156 = vld [vmem:[#allocation2 + $0x3b8] sm:$0xff]
    %v157 = vld [vmem:[#allocation2 + $0x3c0] sm:$0xff]
    %v158 = vld [vmem:[#allocation2 + $0x3c8] sm:$0xff]
    %v159 = vld [vmem:[#allocation2 + $0x3d0] sm:$0xff]
    %v160 = vld [vmem:[#allocation2 + $0x3d8] sm:$0xff]
    %v161 = vld [vmem:[#allocation2 + $0x3e0] sm:$0xff]
    %v162 = vld [vmem:[#allocation2 + $0x3e8] sm:$0xff]
    %v163 = vld [vmem:[#allocation2 + $0x3f0] sm:$0xff]
    %v164 = vld [vmem:[#allocation2 + $0x3f8] sm:$0xff]
    %v293 = vunpack.c.l.b16 %v37
    %v294 = vunpack.c.h.b16 %v37
    %v295 = vunpack.c.l.b16 %v38
    %v296 = vunpack.c.h.b16 %v38
    %v297 = vunpack.c.l.b16 %v39
    %v298 = vunpack.c.h.b16 %v39
    %v299 = vunpack.c.l.b16 %v40
    %v300 = vunpack.c.h.b16 %v40
    %v301 = vunpack.c.l.b16 %v41
    %v302 = vunpack.c.h.b16 %v41
    %v303 = vunpack.c.l.b16 %v42
    %v304 = vunpack.c.h.b16 %v42
    %v305 = vunpack.c.l.b16 %v43
    %v306 = vunpack.c.h.b16 %v43
    %v307 = vunpack.c.l.b16 %v44
    %v308 = vunpack.c.h.b16 %v44
    %v309 = vunpack.c.l.b16 %v45
    %v310 = vunpack.c.h.b16 %v45
    %v311 = vunpack.c.l.b16 %v46
    %v312 = vunpack.c.h.b16 %v46
    %v313 = vunpack.c.l.b16 %v47
    %v314 = vunpack.c.h.b16 %v47
    %v315 = vunpack.c.l.b16 %v48
    %v316 = vunpack.c.h.b16 %v48
    %v317 = vunpack.c.l.b16 %v49
    %v318 = vunpack.c.h.b16 %v49
    %v319 = vunpack.c.l.b16 %v50
    %v320 = vunpack.c.h.b16 %v50
    %v321 = vunpack.c.l.b16 %v51
    %v322 = vunpack.c.h.b16 %v51
    %v323 = vunpack.c.l.b16 %v52
    %v324 = vunpack.c.h.b16 %v52
    %v325 = vunpack.c.l.b16 %v53
    %v326 = vunpack.c.h.b16 %v53
    %v327 = vunpack.c.l.b16 %v54
    %v328 = vunpack.c.h.b16 %v54
    %v329 = vunpack.c.l.b16 %v55
    %v330 = vunpack.c.h.b16 %v55
    %v331 = vunpack.c.l.b16 %v56
    %v332 = vunpack.c.h.b16 %v56
    %v333 = vunpack.c.l.b16 %v57
    %v334 = vunpack.c.h.b16 %v57
    %v335 = vunpack.c.l.b16 %v58
    %v336 = vunpack.c.h.b16 %v58
    %v337 = vunpack.c.l.b16 %v59
    %v338 = vunpack.c.h.b16 %v59
    %v339 = vunpack.c.l.b16 %v60
    %v340 = vunpack.c.h.b16 %v60
    %v341 = vunpack.c.l.b16 %v61
    %v342 = vunpack.c.h.b16 %v61
    %v343 = vunpack.c.l.b16 %v62
    %v344 = vunpack.c.h.b16 %v62
    %v345 = vunpack.c.l.b16 %v63
    %v346 = vunpack.c.h.b16 %v63
    %v347 = vunpack.c.l.b16 %v64
    %v348 = vunpack.c.h.b16 %v64
    %v349 = vunpack.c.l.b16 %v65
    %v350 = vunpack.c.h.b16 %v65
    %v351 = vunpack.c.l.b16 %v66
    %v352 = vunpack.c.h.b16 %v66
    %v353 = vunpack.c.l.b16 %v67
    %v354 = vunpack.c.h.b16 %v67
    %v355 = vunpack.c.l.b16 %v68
    %v356 = vunpack.c.h.b16 %v68
    %v357 = vunpack.c.l.b16 %v69
    %v358 = vunpack.c.h.b16 %v69
    %v359 = vunpack.c.l.b16 %v70
    %v360 = vunpack.c.h.b16 %v70
    %v361 = vunpack.c.l.b16 %v71
    %v362 = vunpack.c.h.b16 %v71
    %v363 = vunpack.c.l.b16 %v72
    %v364 = vunpack.c.h.b16 %v72
    %v365 = vunpack.c.l.b16 %v73
    %v366 = vunpack.c.h.b16 %v73
    %v367 = vunpack.c.l.b16 %v74
    %v368 = vunpack.c.h.b16 %v74
    %v369 = vunpack.c.l.b16 %v75
    %v370 = vunpack.c.h.b16 %v75
    %v371 = vunpack.c.l.b16 %v76
    %v372 = vunpack.c.h.b16 %v76
    %v373 = vunpack.c.l.b16 %v77
    %v374 = vunpack.c.h.b16 %v77
    %v375 = vunpack.c.l.b16 %v78
    %v376 = vunpack.c.h.b16 %v78
    %v377 = vunpack.c.l.b16 %v79
    %v378 = vunpack.c.h.b16 %v79
    %v379 = vunpack.c.l.b16 %v80
    %v380 = vunpack.c.h.b16 %v80
    %v381 = vunpack.c.l.b16 %v81
    %v382 = vunpack.c.h.b16 %v81
    %v383 = vunpack.c.l.b16 %v82
    %v384 = vunpack.c.h.b16 %v82
    %v385 = vunpack.c.l.b16 %v83
    %v386 = vunpack.c.h.b16 %v83
    %v387 = vunpack.c.l.b16 %v84
    %v388 = vunpack.c.h.b16 %v84
    %v389 = vunpack.c.l.b16 %v85
    %v390 = vunpack.c.h.b16 %v85
    %v391 = vunpack.c.l.b16 %v86
    %v392 = vunpack.c.h.b16 %v86
    %v393 = vunpack.c.l.b16 %v87
    %v394 = vunpack.c.h.b16 %v87
    %v395 = vunpack.c.l.b16 %v88
    %v396 = vunpack.c.h.b16 %v88
    %v397 = vunpack.c.l.b16 %v89
    %v398 = vunpack.c.h.b16 %v89
    %v399 = vunpack.c.l.b16 %v90
    %v400 = vunpack.c.h.b16 %v90
    %v401 = vunpack.c.l.b16 %v91
    %v402 = vunpack.c.h.b16 %v91
    %v403 = vunpack.c.l.b16 %v92
    %v404 = vunpack.c.h.b16 %v92
    %v405 = vunpack.c.l.b16 %v93
    %v406 = vunpack.c.h.b16 %v93
    %v407 = vunpack.c.l.b16 %v94
    %v408 = vunpack.c.h.b16 %v94
    %v409 = vunpack.c.l.b16 %v95
    %v410 = vunpack.c.h.b16 %v95
    %v411 = vunpack.c.l.b16 %v96
    %v412 = vunpack.c.h.b16 %v96
    %v413 = vunpack.c.l.b16 %v97
    %v414 = vunpack.c.h.b16 %v97
    %v415 = vunpack.c.l.b16 %v98
    %v416 = vunpack.c.h.b16 %v98
    %v417 = vunpack.c.l.b16 %v99
    %v418 = vunpack.c.h.b16 %v99
    %v419 = vunpack.c.l.b16 %v100
    %v420 = vunpack.c.h.b16 %v100
    %v421 = vunpack.c.l.b16 %v101
    %v422 = vunpack.c.h.b16 %v101
    %v423 = vunpack.c.l.b16 %v102
    %v424 = vunpack.c.h.b16 %v102
    %v425 = vunpack.c.l.b16 %v103
    %v426 = vunpack.c.h.b16 %v103
    %v427 = vunpack.c.l.b16 %v104
    %v428 = vunpack.c.h.b16 %v104
    %v429 = vunpack.c.l.b16 %v105
    %v430 = vunpack.c.h.b16 %v105
    %v431 = vunpack.c.l.b16 %v106
    %v432 = vunpack.c.h.b16 %v106
    %v433 = vunpack.c.l.b16 %v107
    %v434 = vunpack.c.h.b16 %v107
    %v435 = vunpack.c.l.b16 %v108
    %v436 = vunpack.c.h.b16 %v108
    %v437 = vunpack.c.l.b16 %v109
    %v438 = vunpack.c.h.b16 %v109
    %v439 = vunpack.c.l.b16 %v110
    %v440 = vunpack.c.h.b16 %v110
    %v441 = vunpack.c.l.b16 %v111
    %v442 = vunpack.c.h.b16 %v111
    %v443 = vunpack.c.l.b16 %v112
    %v444 = vunpack.c.h.b16 %v112
    %v445 = vunpack.c.l.b16 %v113
    %v446 = vunpack.c.h.b16 %v113
    %v447 = vunpack.c.l.b16 %v114
    %v448 = vunpack.c.h.b16 %v114
    %v449 = vunpack.c.l.b16 %v115
    %v450 = vunpack.c.h.b16 %v115
    %v451 = vunpack.c.l.b16 %v116
    %v452 = vunpack.c.h.b16 %v116
    %v453 = vunpack.c.l.b16 %v117
    %v454 = vunpack.c.h.b16 %v117
    %v455 = vunpack.c.l.b16 %v118
    %v456 = vunpack.c.h.b16 %v118
    %v457 = vunpack.c.l.b16 %v119
    %v458 = vunpack.c.h.b16 %v119
    %v459 = vunpack.c.l.b16 %v120
    %v460 = vunpack.c.h.b16 %v120
    %v461 = vunpack.c.l.b16 %v121
    %v462 = vunpack.c.h.b16 %v121
    %v463 = vunpack.c.l.b16 %v122
    %v464 = vunpack.c.h.b16 %v122
    %v465 = vunpack.c.l.b16 %v123
    %v466 = vunpack.c.h.b16 %v123
    %v467 = vunpack.c.l.b16 %v124
    %v468 = vunpack.c.h.b16 %v124
    %v469 = vunpack.c.l.b16 %v125
    %v470 = vunpack.c.h.b16 %v125
    %v471 = vunpack.c.l.b16 %v126
    %v472 = vunpack.c.h.b16 %v126
    %v473 = vunpack.c.l.b16 %v127
    %v474 = vunpack.c.h.b16 %v127
    %v475 = vunpack.c.l.b16 %v128
    %v476 = vunpack.c.h.b16 %v128
    %v477 = vunpack.c.l.b16 %v129
    %v478 = vunpack.c.h.b16 %v129
    %v479 = vunpack.c.l.b16 %v130
    %v480 = vunpack.c.h.b16 %v130
    %v481 = vunpack.c.l.b16 %v131
    %v482 = vunpack.c.h.b16 %v131
    %v483 = vunpack.c.l.b16 %v132
    %v484 = vunpack.c.h.b16 %v132
    %v485 = vunpack.c.l.b16 %v133
    %v486 = vunpack.c.h.b16 %v133
    %v487 = vunpack.c.l.b16 %v134
    %v488 = vunpack.c.h.b16 %v134
    %v489 = vunpack.c.l.b16 %v135
    %v490 = vunpack.c.h.b16 %v135
    %v491 = vunpack.c.l.b16 %v136
    %v492 = vunpack.c.h.b16 %v136
    %v493 = vunpack.c.l.b16 %v137
    %v494 = vunpack.c.h.b16 %v137
    %v495 = vunpack.c.l.b16 %v138
    %v496 = vunpack.c.h.b16 %v138
    %v497 = vunpack.c.l.b16 %v139
    %v498 = vunpack.c.h.b16 %v139
    %v499 = vunpack.c.l.b16 %v140
    %v500 = vunpack.c.h.b16 %v140
    %v501 = vunpack.c.l.b16 %v141
    %v502 = vunpack.c.h.b16 %v141
    %v503 = vunpack.c.l.b16 %v142
    %v504 = vunpack.c.h.b16 %v142
    %v505 = vunpack.c.l.b16 %v143
    %v506 = vunpack.c.h.b16 %v143
    %v507 = vunpack.c.l.b16 %v144
    %v508 = vunpack.c.h.b16 %v144
    %v509 = vunpack.c.l.b16 %v145
    %v510 = vunpack.c.h.b16 %v145
    %v511 = vunpack.c.l.b16 %v146
    %v512 = vunpack.c.h.b16 %v146
    %v513 = vunpack.c.l.b16 %v147
    %v514 = vunpack.c.h.b16 %v147
    %v515 = vunpack.c.l.b16 %v148
    %v516 = vunpack.c.h.b16 %v148
    %v517 = vunpack.c.l.b16 %v149
    %v518 = vunpack.c.h.b16 %v149
    %v519 = vunpack.c.l.b16 %v150
    %v520 = vunpack.c.h.b16 %v150
    %v521 = vunpack.c.l.b16 %v151
    %v522 = vunpack.c.h.b16 %v151
    %v523 = vunpack.c.l.b16 %v152
    %v524 = vunpack.c.h.b16 %v152
    %v525 = vunpack.c.l.b16 %v153
    %v526 = vunpack.c.h.b16 %v153
    %v527 = vunpack.c.l.b16 %v154
    %v528 = vunpack.c.h.b16 %v154
    %v529 = vunpack.c.l.b16 %v155
    %v530 = vunpack.c.h.b16 %v155
    %v531 = vunpack.c.l.b16 %v156
    %v532 = vunpack.c.h.b16 %v156
    %v533 = vunpack.c.l.b16 %v157
    %v534 = vunpack.c.h.b16 %v157
    %v535 = vunpack.c.l.b16 %v158
    %v536 = vunpack.c.h.b16 %v158
    %v537 = vunpack.c.l.b16 %v159
    %v538 = vunpack.c.h.b16 %v159
    %v539 = vunpack.c.l.b16 %v160
    %v540 = vunpack.c.h.b16 %v160
    %v541 = vunpack.c.l.b16 %v161
    %v542 = vunpack.c.h.b16 %v161
    %v543 = vunpack.c.l.b16 %v162
    %v544 = vunpack.c.h.b16 %v162
    %v545 = vunpack.c.l.b16 %v163
    %v546 = vunpack.c.h.b16 %v163
    %v547 = vunpack.c.l.b16 %v164
    %v548 = vunpack.c.h.b16 %v164
    %v549 = vpack.c.b16 %v297, %v293
    %v550 = vpack.c.b16 %v298, %v294
    %v551 = vpack.c.b16 %v299, %v295
    %v552 = vpack.c.b16 %v300, %v296
    %v553 = vpack.c.b16 %v305, %v301
    %v554 = vpack.c.b16 %v306, %v302
    %v555 = vpack.c.b16 %v307, %v303
    %v556 = vpack.c.b16 %v308, %v304
    %v557 = vpack.c.b16 %v313, %v309
    %v558 = vpack.c.b16 %v314, %v310
    %v559 = vpack.c.b16 %v315, %v311
    %v560 = vpack.c.b16 %v316, %v312
    %v561 = vpack.c.b16 %v321, %v317
    %v562 = vpack.c.b16 %v322, %v318
    %v563 = vpack.c.b16 %v323, %v319
    %v564 = vpack.c.b16 %v324, %v320
    %v565 = vpack.c.b16 %v329, %v325
    %v566 = vpack.c.b16 %v330, %v326
    %v567 = vpack.c.b16 %v331, %v327
    %v568 = vpack.c.b16 %v332, %v328
    %v569 = vpack.c.b16 %v337, %v333
    %v570 = vpack.c.b16 %v338, %v334
    %v571 = vpack.c.b16 %v339, %v335
    %v572 = vpack.c.b16 %v340, %v336
    %v573 = vpack.c.b16 %v345, %v341
    %v574 = vpack.c.b16 %v346, %v342
    %v575 = vpack.c.b16 %v347, %v343
    %v576 = vpack.c.b16 %v348, %v344
    %v577 = vpack.c.b16 %v353, %v349
    %v578 = vpack.c.b16 %v354, %v350
    %v579 = vpack.c.b16 %v355, %v351
    %v580 = vpack.c.b16 %v356, %v352
    %v581 = vpack.c.b16 %v361, %v357
    %v582 = vpack.c.b16 %v362, %v358
    %v583 = vpack.c.b16 %v363, %v359
    %v584 = vpack.c.b16 %v364, %v360
    %v585 = vpack.c.b16 %v369, %v365
    %v586 = vpack.c.b16 %v370, %v366
    %v587 = vpack.c.b16 %v371, %v367
    %v588 = vpack.c.b16 %v372, %v368
    %v589 = vpack.c.b16 %v377, %v373
    %v590 = vpack.c.b16 %v378, %v374
    %v591 = vpack.c.b16 %v379, %v375
    %v592 = vpack.c.b16 %v380, %v376
    %v593 = vpack.c.b16 %v385, %v381
    %v594 = vpack.c.b16 %v386, %v382
    %v595 = vpack.c.b16 %v387, %v383
    %v596 = vpack.c.b16 %v388, %v384
    %v597 = vpack.c.b16 %v393, %v389
    %v598 = vpack.c.b16 %v394, %v390
    %v599 = vpack.c.b16 %v395, %v391
    %v600 = vpack.c.b16 %v396, %v392
    %v601 = vpack.c.b16 %v401, %v397
    %v602 = vpack.c.b16 %v402, %v398
    %v603 = vpack.c.b16 %v403, %v399
    %v604 = vpack.c.b16 %v404, %v400
    %v605 = vpack.c.b16 %v409, %v405
    %v606 = vpack.c.b16 %v410, %v406
    %v607 = vpack.c.b16 %v411, %v407
    %v608 = vpack.c.b16 %v412, %v408
    %v609 = vpack.c.b16 %v417, %v413
    %v610 = vpack.c.b16 %v418, %v414
    %v611 = vpack.c.b16 %v419, %v415
    %v612 = vpack.c.b16 %v420, %v416
    %v613 = vpack.c.b16 %v425, %v421
    %v614 = vpack.c.b16 %v426, %v422
    %v615 = vpack.c.b16 %v427, %v423
    %v616 = vpack.c.b16 %v428, %v424
    %v617 = vpack.c.b16 %v433, %v429
    %v618 = vpack.c.b16 %v434, %v430
    %v619 = vpack.c.b16 %v435, %v431
    %v620 = vpack.c.b16 %v436, %v432
    %v621 = vpack.c.b16 %v441, %v437
    %v622 = vpack.c.b16 %v442, %v438
    %v623 = vpack.c.b16 %v443, %v439
    %v624 = vpack.c.b16 %v444, %v440
    %v625 = vpack.c.b16 %v449, %v445
    %v626 = vpack.c.b16 %v450, %v446
    %v627 = vpack.c.b16 %v451, %v447
    %v628 = vpack.c.b16 %v452, %v448
    %v629 = vpack.c.b16 %v457, %v453
    %v630 = vpack.c.b16 %v458, %v454
    %v631 = vpack.c.b16 %v459, %v455
    %v632 = vpack.c.b16 %v460, %v456
    %v633 = vpack.c.b16 %v465, %v461
    %v634 = vpack.c.b16 %v466, %v462
    %v635 = vpack.c.b16 %v467, %v463
    %v636 = vpack.c.b16 %v468, %v464
    %v637 = vpack.c.b16 %v473, %v469
    %v638 = vpack.c.b16 %v474, %v470
    %v639 = vpack.c.b16 %v475, %v471
    %v640 = vpack.c.b16 %v476, %v472
    %v641 = vpack.c.b16 %v481, %v477
    %v642 = vpack.c.b16 %v482, %v478
    %v643 = vpack.c.b16 %v483, %v479
    %v644 = vpack.c.b16 %v484, %v480
    %v645 = vpack.c.b16 %v489, %v485
    %v646 = vpack.c.b16 %v490, %v486
    %v647 = vpack.c.b16 %v491, %v487
    %v648 = vpack.c.b16 %v492, %v488
    %v649 = vpack.c.b16 %v497, %v493
    %v650 = vpack.c.b16 %v498, %v494
    %v651 = vpack.c.b16 %v499, %v495
    %v652 = vpack.c.b16 %v500, %v496
    %v653 = vpack.c.b16 %v505, %v501
    %v654 = vpack.c.b16 %v506, %v502
    %v655 = vpack.c.b16 %v507, %v503
    %v656 = vpack.c.b16 %v508, %v504
    %v657 = vpack.c.b16 %v513, %v509
    %v658 = vpack.c.b16 %v514, %v510
    %v659 = vpack.c.b16 %v515, %v511
    %v660 = vpack.c.b16 %v516, %v512
    %v661 = vpack.c.b16 %v521, %v517
    %v662 = vpack.c.b16 %v522, %v518
    %v663 = vpack.c.b16 %v523, %v519
    %v664 = vpack.c.b16 %v524, %v520
    %v665 = vpack.c.b16 %v529, %v525
    %v666 = vpack.c.b16 %v530, %v526
    %v667 = vpack.c.b16 %v531, %v527
    %v668 = vpack.c.b16 %v532, %v528
    %v669 = vpack.c.b16 %v537, %v533
    %v670 = vpack.c.b16 %v538, %v534
    %v671 = vpack.c.b16 %v539, %v535
    %v672 = vpack.c.b16 %v540, %v536
    %v673 = vpack.c.b16 %v545, %v541
    %v674 = vpack.c.b16 %v546, %v542
    %v675 = vpack.c.b16 %v547, %v543
    %v676 = vpack.c.b16 %v548, %v544
    %805 = vmatprep.subr.bf16.mxu0 %v550
    %806 = vmatpush1.bf16.msra.mxu0 %v549
    %807 = vmatprep.subr.bf16.mxu0 %v554
    %808 = vmatpush1.bf16.msra.mxu0 %v553
    %809 = vmatprep.subr.bf16.mxu0 %v558
    %810 = vmatpush1.bf16.msra.mxu0 %v557
    %811 = vmatprep.subr.bf16.mxu0 %v562
    %812 = vmatpush1.bf16.msra.mxu0 %v561
    %813 = vmatprep.subr.bf16.mxu0 %v566
    %814 = vmatpush1.bf16.msra.mxu0 %v565
    %815 = vmatprep.subr.bf16.mxu0 %v570
    %816 = vmatpush1.bf16.msra.mxu0 %v569
    %817 = vmatprep.subr.bf16.mxu0 %v574
    %818 = vmatpush1.bf16.msra.mxu0 %v573
    %819 = vmatprep.subr.bf16.mxu0 %v578
    %820 = vmatpush1.bf16.msra.mxu0 %v577
    %821 = vmatprep.subr.bf16.mxu0 %v582
    %822 = vmatpush1.bf16.msra.mxu0 %v581
    %823 = vmatprep.subr.bf16.mxu0 %v586
    %824 = vmatpush1.bf16.msra.mxu0 %v585
    %825 = vmatprep.subr.bf16.mxu0 %v590
    %826 = vmatpush1.bf16.msra.mxu0 %v589
    %827 = vmatprep.subr.bf16.mxu0 %v594
    %828 = vmatpush1.bf16.msra.mxu0 %v593
    %829 = vmatprep.subr.bf16.mxu0 %v598
    %830 = vmatpush1.bf16.msra.mxu0 %v597
    %831 = vmatprep.subr.bf16.mxu0 %v602
    %832 = vmatpush1.bf16.msra.mxu0 %v601
    %833 = vmatprep.subr.bf16.mxu0 %v606
    %834 = vmatpush1.bf16.msra.mxu0 %v605
    %835 = vmatprep.subr.bf16.mxu0 %v610
    %836 = vmatpush1.bf16.msra.mxu0 %v609
    %837 = vmatprep.mubr.bf16.mxu0 %v34
    %838 = vmatmul.mubr.bf16.gmra.mrb[0].mxu0 %v33
    %v839 = vpop.f32.mrb[0].mxu0
    %v840 = vadd.f32 0.0, %v839
    %v841 = vpop.f32.mrb[0].mxu0
    %v842 = vadd.f32 0.0, %v841
    %v843 = vpop.f32.mrb[0].mxu0
    %v844 = vpop.f32.mrb[0].mxu0
    %845 = vdwg.mxu0
    %846 = vmatprep.subr.bf16.mxu0 %v614
    %847 = vmatpush1.bf16.msra.mxu0 %v613
    %848 = vmatprep.subr.bf16.mxu0 %v618
    %849 = vmatpush1.bf16.msra.mxu0 %v617
    %850 = vmatprep.subr.bf16.mxu0 %v622
    %851 = vmatpush1.bf16.msra.mxu0 %v621
    %852 = vmatprep.subr.bf16.mxu0 %v626
    %853 = vmatpush1.bf16.msra.mxu0 %v625
    %854 = vmatprep.subr.bf16.mxu0 %v630
    %855 = vmatpush1.bf16.msra.mxu0 %v629
    %856 = vmatprep.subr.bf16.mxu0 %v634
    %857 = vmatpush1.bf16.msra.mxu0 %v633
    %858 = vmatprep.subr.bf16.mxu0 %v638
    %859 = vmatpush1.bf16.msra.mxu0 %v637
    %860 = vmatprep.subr.bf16.mxu0 %v642
    %861 = vmatpush1.bf16.msra.mxu0 %v641
    %862 = vmatprep.subr.bf16.mxu0 %v646
    %863 = vmatpush1.bf16.msra.mxu0 %v645
    %864 = vmatprep.subr.bf16.mxu0 %v650
    %865 = vmatpush1.bf16.msra.mxu0 %v649
    %866 = vmatprep.subr.bf16.mxu0 %v654
    %867 = vmatpush1.bf16.msra.mxu0 %v653
    %868 = vmatprep.subr.bf16.mxu0 %v658
    %869 = vmatpush1.bf16.msra.mxu0 %v657
    %870 = vmatprep.subr.bf16.mxu0 %v662
    %871 = vmatpush1.bf16.msra.mxu0 %v661
    %872 = vmatprep.subr.bf16.mxu0 %v666
    %873 = vmatpush1.bf16.msra.mxu0 %v665
    %874 = vmatprep.subr.bf16.mxu0 %v670
    %875 = vmatpush1.bf16.msra.mxu0 %v669
    %876 = vmatprep.subr.bf16.mxu0 %v674
    %877 = vmatpush1.bf16.msra.mxu0 %v673
    %878 = vmatprep.mubr.bf16.mxu0 %v36
    %879 = vmatmul.mubr.bf16.gmra.mrb[0].mxu0 %v35
    %v880 = vpop.f32.mrb[0].mxu0
    %v881 = vadd.f32 %v840, %v880
    %v882 = vpop.f32.mrb[0].mxu0
    %v883 = vadd.f32 %v842, %v882
    %v884 = vpop.f32.mrb[0].mxu0
    %v885 = vpop.f32.mrb[0].mxu0
    %886 = vdwg.mxu0
    %887 = vmatprep.subr.bf16.mxu0 %v552
    %888 = vmatpush1.bf16.msra.mxu0 %v551
    %889 = vmatprep.subr.bf16.mxu0 %v556
    %890 = vmatpush1.bf16.msra.mxu0 %v555
    %891 = vmatprep.subr.bf16.mxu0 %v560
    %892 = vmatpush1.bf16.msra.mxu0 %v559
    %893 = vmatprep.subr.bf16.mxu0 %v564
    %894 = vmatpush1.bf16.msra.mxu0 %v563
    %895 = vmatprep.subr.bf16.mxu0 %v568
    %896 = vmatpush1.bf16.msra.mxu0 %v567
    %897 = vmatprep.subr.bf16.mxu0 %v572
    %898 = vmatpush1.bf16.msra.mxu0 %v571
    %899 = vmatprep.subr.bf16.mxu0 %v576
    %900 = vmatpush1.bf16.msra.mxu0 %v575
    %901 = vmatprep.subr.bf16.mxu0 %v580
    %902 = vmatpush1.bf16.msra.mxu0 %v579
    %903 = vmatprep.subr.bf16.mxu0 %v584
    %904 = vmatpush1.bf16.msra.mxu0 %v583
    %905 = vmatprep.subr.bf16.mxu0 %v588
    %906 = vmatpush1.bf16.msra.mxu0 %v587
    %907 = vmatprep.subr.bf16.mxu0 %v592
    %908 = vmatpush1.bf16.msra.mxu0 %v591
    %909 = vmatprep.subr.bf16.mxu0 %v596
    %910 = vmatpush1.bf16.msra.mxu0 %v595
    %911 = vmatprep.subr.bf16.mxu0 %v600
    %912 = vmatpush1.bf16.msra.mxu0 %v599
    %913 = vmatprep.subr.bf16.mxu0 %v604
    %914 = vmatpush1.bf16.msra.mxu0 %v603
    %915 = vmatprep.subr.bf16.mxu0 %v608
    %916 = vmatpush1.bf16.msra.mxu0 %v607
    %917 = vmatprep.subr.bf16.mxu0 %v612
    %918 = vmatpush1.bf16.msra.mxu0 %v611
    %919 = vmatprep.mubr.bf16.mxu0 %v34
    %920 = vmatmul.mubr.bf16.gmra.mrb[0].mxu0 %v33
    %v921 = vpop.f32.mrb[0].mxu0
    %v922 = vadd.f32 0.0, %v921
    %v923 = vpop.f32.mrb[0].mxu0
    %v924 = vadd.f32 0.0, %v923
    %v925 = vpop.f32.mrb[0].mxu0
    %v926 = vpop.f32.mrb[0].mxu0
    %927 = vdwg.mxu0
    %928 = vmatprep.subr.bf16.mxu0 %v616
    %929 = vmatpush1.bf16.msra.mxu0 %v615
    %930 = vmatprep.subr.bf16.mxu0 %v620
    %931 = vmatpush1.bf16.msra.mxu0 %v619
    %932 = vmatprep.subr.bf16.mxu0 %v624
    %933 = vmatpush1.bf16.msra.mxu0 %v623
    %934 = vmatprep.subr.bf16.mxu0 %v628
    %935 = vmatpush1.bf16.msra.mxu0 %v627
    %936 = vmatprep.subr.bf16.mxu0 %v632
    %937 = vmatpush1.bf16.msra.mxu0 %v631
    %938 = vmatprep.subr.bf16.mxu0 %v636
    %939 = vmatpush1.bf16.msra.mxu0 %v635
    %940 = vmatprep.subr.bf16.mxu0 %v640
    %941 = vmatpush1.bf16.msra.mxu0 %v639
    %942 = vmatprep.subr.bf16.mxu0 %v644
    %943 = vmatpush1.bf16.msra.mxu0 %v643
    %944 = vmatprep.subr.bf16.mxu0 %v648
    %945 = vmatpush1.bf16.msra.mxu0 %v647
    %946 = vmatprep.subr.bf16.mxu0 %v652
    %947 = vmatpush1.bf16.msra.mxu0 %v651
    %948 = vmatprep.subr.bf16.mxu0 %v656
    %949 = vmatpush1.bf16.msra.mxu0 %v655
    %950 = vmatprep.subr.bf16.mxu0 %v660
    %951 = vmatpush1.bf16.msra.mxu0 %v659
    %952 = vmatprep.subr.bf16.mxu0 %v664
    %953 = vmatpush1.bf16.msra.mxu0 %v663
    %954 = vmatprep.subr.bf16.mxu0 %v668
    %955 = vmatpush1.bf16.msra.mxu0 %v667
    %956 = vmatprep.subr.bf16.mxu0 %v672
    %957 = vmatpush1.bf16.msra.mxu0 %v671
    %958 = vmatprep.subr.bf16.mxu0 %v676
    %959 = vmatpush1.bf16.msra.mxu0 %v675
    %960 = vmatprep.mubr.bf16.mxu0 %v36
    %961 = vmatmul.mubr.bf16.gmra.mrb[0].mxu0 %v35
    %v962 = vpop.f32.mrb[0].mxu0
    %v963 = vadd.f32 %v922, %v962
    %v964 = vpop.f32.mrb[0].mxu0
    %v965 = vadd.f32 %v924, %v964
    %v966 = vpop.f32.mrb[0].mxu0
    %v967 = vpop.f32.mrb[0].mxu0
    %968 = vdwg.mxu0
    %v973 = vcombine.low %v881, %v883
    %v974 = vcombine.low %v963, %v965
    %977 = vst [vmem:[%s2] sm:$0xff] %v973
    %978 = vst [vmem:[%s2 + $0x8] sm:$0xff] %v974
    // Predicated region
    $region14: #{_propagate_fused.1} parent=1 // pred_check
      _
    $region15: #{_propagate_fused.1} parent=1 // pred_check_branch
      %980 = sbr.rel (0) target = $region17
    $region16: #{_propagate_fused.1} parent=1 // pred_region
      _
    $region17: #{_propagate_fused.1} parent=1 // pred_fallthru
      _
    // Predicated region
    $region18: #{_propagate_fused.1} parent=1 // pred_check
      _
    $region19: #{_propagate_fused.1} parent=1 // pred_check_branch
      %982 = sbr.rel (0) target = $region21
    $region20: #{_propagate_fused.1} parent=1 // pred_region
      _
    $region21: #{_propagate_fused.1} parent=1 // pred_fallthru
      _
    %983 = vsyncpa [#allocation3], 1

</llo_original>
